<compile_context>
chip_gen: v7x
topology: tpu7x:2x2x1
jax: 0.10.0
libtpu: 0.0.40
codegen_flags: <defaults>
</compile_context>

<pallas_src>
import jax
import jax.numpy as jnp
from jax.experimental import pallas as pl
from jax.experimental.pallas import tpu as pltpu

LN_EPS = 1e-5
# Head column order: [stop_loss, take_profit, position_size, risk_score]
HEAD_SCALES = (0.2, 0.5, 1.0, 1.0)


def _risk_head_kernel(x_ref, w1_ref, b1_ref, g_ref, beta_ref,
                      w2_ref, b2_ref, w3_ref, b3_ref, o_ref):
    # --- Linear(d_model -> hidden): bf16 operands, f32 accumulation (MXU) ---
    x = x_ref[...].astype(jnp.bfloat16)                       # cast in-kernel
    h = jnp.dot(x, w1_ref[...], preferred_element_type=jnp.float32) + b1_ref[...]

    # --- LayerNorm(hidden): two-pass variance (matches torch LayerNorm), f32 ---
    mean = jnp.mean(h, axis=-1, keepdims=True)
    c = h - mean
    var = jnp.mean(c * c, axis=-1, keepdims=True)
    hn = c * jax.lax.rsqrt(var + LN_EPS)
    hn = hn * g_ref[...] + beta_ref[...]

    # --- ReLU (+ Dropout: identity in eval mode) ---
    hn = jnp.maximum(hn, 0.0)
    # TODO(synk): training-mode dropout not implemented (inference / eval semantics).

    # --- Linear(hidden -> hidden//2) + ReLU ---
    f = jnp.dot(hn.astype(jnp.bfloat16), w2_ref[...],
                preferred_element_type=jnp.float32) + b2_ref[...]
    f = jnp.maximum(f, 0.0)

    # --- 4 fused heads: Linear(hidden//2 -> 4) + sigmoid + per-head scale ---
    logits = jnp.dot(f.astype(jnp.bfloat16), w3_ref[...],
                     preferred_element_type=jnp.float32) + b3_ref[...]
    col = jax.lax.broadcasted_iota(jnp.int32, logits.shape, 1)
    scale = jnp.where(col == 0, HEAD_SCALES[0],
                      jnp.where(col == 1, HEAD_SCALES[1], 1.0))
    o_ref[...] = jax.nn.sigmoid(logits) * scale


def _choose_tm(B, tm):
    """Pick a batch tile: as fat as possible (amortize per-step overhead),
    but keep >=2 (even) grid steps so v7x megacore can shard the batch axis."""
    if B <= 16:
        return B                      # too small to split usefully (single step)
    steps = max(2, pl.cdiv(B, tm))
    if steps % 2:
        steps += 1                    # even step count: balanced across 2 TCs
    TM = -(-B // steps)               # ceil(B / steps)
    TM = -(-TM // 8) * 8              # round up to sublane multiple of 8
    return TM


def risk_management_head(x, params, *, tm=1024):
    """x: (B, d_model) float32; params as produced by init_params (bf16 weights).
    Returns dict of (B, 1) float32 arrays."""
    B, d_model = x.shape
    hidden = params["w1"].shape[1]
    half = params["w2"].shape[1]

    TM = _choose_tm(B, tm)
    grid = (pl.cdiv(B, TM),)

    # No-op when params already bf16 (convert_element_type with same dtype).
    w1 = params["w1"].astype(jnp.bfloat16)
    w2 = params["w2"].astype(jnp.bfloat16)
    w3 = params["w3"].astype(jnp.bfloat16)
    b1, gamma, beta = params["b1"], params["gamma"], params["beta"]
    b2, b3 = params["b2"], params["b3"]

    # Weight / bias / LN tiles stay resident in VMEM across all grid steps.
    resident = lambda shape: pl.BlockSpec(shape, lambda i: tuple(0 for _ in shape))

    out = pl.pallas_call(
        _risk_head_kernel,
        out_shape=jax.ShapeDtypeStruct((B, 4), jnp.float32),
        grid=grid,
        in_specs=[
            pl.BlockSpec((TM, d_model), lambda i: (i, 0)),   # x tile (streamed, f32)
            resident((d_model, hidden)),                     # w1 (bf16)
            resident((1, hidden)),                           # b1
            resident((1, hidden)),                           # gamma
            resident((1, hidden)),                           # beta
            resident((hidden, half)),                        # w2 (bf16)
            resident((1, half)),                             # b2
            resident((half, 4)),                             # w3 (bf16)
            resident((1, 4)),                                # b3
        ],
        out_specs=pl.BlockSpec((TM, 4), lambda i: (i, 0)),
        compiler_params=pltpu.CompilerParams(
            dimension_semantics=("parallel",),
        ),
    )(x, w1, b1, gamma, beta, w2, b2, w3, b3)

    return {
        "stop_loss": out[:, 0:1],
        "take_profit": out[:, 1:2],
        "position_size": out[:, 2:3],
        "risk_score": out[:, 3:4],
    }


def init_params(key, d_model, hidden_dim=128):
    half = hidden_dim // 2
    ks = jax.random.split(key, 6)
    # Deterministic synthetic init (not a checkpoint load). Weights stored bf16
    # once (MXU operand dtype); biases / LN params stay f32.
    w1 = (jax.random.normal(ks[0], (d_model, hidden_dim), jnp.float32)
          * (1.0 / jnp.sqrt(d_model))).astype(jnp.bfloat16)
    b1 = jax.random.normal(ks[1], (1, hidden_dim), jnp.float32) * 0.01
    gamma = jnp.ones((1, hidden_dim), jnp.float32)
    beta = jnp.zeros((1, hidden_dim), jnp.float32)
    w2 = (jax.random.normal(ks[2], (hidden_dim, half), jnp.float32)
          * (1.0 / jnp.sqrt(hidden_dim))).astype(jnp.bfloat16)
    b2 = jax.random.normal(ks[3], (1, half), jnp.float32) * 0.01
    # 4 head weight vectors packed column-wise:
    # [stop_loss, take_profit, position_size, risk_score]
    w3 = (jax.random.normal(ks[4], (half, 4), jnp.float32)
          * (1.0 / jnp.sqrt(half))).astype(jnp.bfloat16)
    b3 = jax.random.normal(ks[5], (1, 4), jnp.float32) * 0.01
    return {"w1": w1, "b1": b1, "gamma": gamma, "beta": beta,
            "w2": w2, "b2": b2, "w3": w3, "b3": b3}


def _reference(x, p):
    """Pure-JAX reference mirroring the kernel's precision policy
    (bf16 matmul operands, f32 accumulation / elementwise)."""
    def bdot(a, b):
        return jnp.dot(a.astype(jnp.bfloat16), b.astype(jnp.bfloat16),
                       preferred_element_type=jnp.float32)

    h = bdot(x, p["w1"]) + p["b1"]
    mean = h.mean(-1, keepdims=True)
    var = ((h - mean) ** 2).mean(-1, keepdims=True)
    h = (h - mean) / jnp.sqrt(var + LN_EPS) * p["gamma"] + p["beta"]
    h = jnp.maximum(h, 0.0)
    f = jnp.maximum(bdot(h, p["w2"]) + p["b2"], 0.0)
    logits = bdot(f, p["w3"]) + p["b3"]
    s = jax.nn.sigmoid(logits)
    return {
        "stop_loss": s[:, 0:1] * 0.2,
        "take_profit": s[:, 1:2] * 0.5,
        "position_size": s[:, 2:3],
        "risk_score": s[:, 3:4],
    }


if __name__ == "__main__":
    key = jax.random.PRNGKey(0)
    kx, kp = jax.random.split(key)

    # Small but MXU-friendly shapes: 2 grid steps (even -> both v7x cores busy).
    batch, d_model, hidden_dim = 256, 64, 128
    x = jax.random.normal(kx, (batch, d_model), jnp.float32)
    params = init_params(kp, d_model, hidden_dim)

    fwd = jax.jit(risk_management_head)
    out = fwd(x, params)
    out = jax.tree_util.tree_map(jax.block_until_ready, out)

    ref = _reference(x, params)
    for k in ("stop_loss", "take_profit", "position_size", "risk_score"):
        assert out[k].shape == (batch, 1), (k, out[k].shape)
        assert jnp.allclose(out[k], ref[k], atol=5e-3, rtol=5e-3), k

    print("KERNEL_OK")
</pallas_src>

<mosaic_0001>
module attributes {stable_mosaic.version = 11 : i64} {
  func.func @_risk_head_kernel(%arg0: i32, %arg1: memref<128x64xf32, #tpu.memory_space<vmem>>, %arg2: memref<64x128xbf16, #tpu.memory_space<vmem>>, %arg3: memref<1x128xf32, #tpu.memory_space<vmem>>, %arg4: memref<1x128xf32, #tpu.memory_space<vmem>>, %arg5: memref<1x128xf32, #tpu.memory_space<vmem>>, %arg6: memref<128x64xbf16, #tpu.memory_space<vmem>>, %arg7: memref<1x64xf32, #tpu.memory_space<vmem>>, %arg8: memref<64x4xbf16, #tpu.memory_space<vmem>>, %arg9: memref<1x4xf32, #tpu.memory_space<vmem>>, %arg10: memref<128x4xf32, #tpu.memory_space<vmem>>) attributes {dimension_semantics = [#tpu.dimension_semantics<parallel>], iteration_bounds = array<i64: 2>, scalar_prefetch = 0 : i64, scratch_operands = 0 : i64, tpu.core_type = #tpu.core_type<tc>, window_params = [{transform_indices = @transform_0, window_bounds = array<i64: 128, 64>}, {pipeline_mode = #tpu.pipeline_mode<synchronous>, transform_indices = @transform_1, window_bounds = array<i64: 64, 128>}, {pipeline_mode = #tpu.pipeline_mode<synchronous>, transform_indices = @transform_2, window_bounds = array<i64: 1, 128>}, {pipeline_mode = #tpu.pipeline_mode<synchronous>, transform_indices = @transform_3, window_bounds = array<i64: 1, 128>}, {pipeline_mode = #tpu.pipeline_mode<synchronous>, transform_indices = @transform_4, window_bounds = array<i64: 1, 128>}, {pipeline_mode = #tpu.pipeline_mode<synchronous>, transform_indices = @transform_5, window_bounds = array<i64: 128, 64>}, {pipeline_mode = #tpu.pipeline_mode<synchronous>, transform_indices = @transform_6, window_bounds = array<i64: 1, 64>}, {pipeline_mode = #tpu.pipeline_mode<synchronous>, transform_indices = @transform_7, window_bounds = array<i64: 64, 4>}, {pipeline_mode = #tpu.pipeline_mode<synchronous>, transform_indices = @transform_8, window_bounds = array<i64: 1, 4>}, {transform_indices = @transform_9, window_bounds = array<i64: 128, 4>}]} {
    %c0 = arith.constant 0 : index
    %c0_0 = arith.constant 0 : index
    %0 = vector.load %arg1[%c0, %c0_0] : memref<128x64xf32, #tpu.memory_space<vmem>>, vector<128x64xf32>
    %1 = arith.truncf %0 : vector<128x64xf32> to vector<128x64xbf16>
    %c0_1 = arith.constant 0 : index
    %c0_2 = arith.constant 0 : index
    %2 = vector.load %arg2[%c0_1, %c0_2] : memref<64x128xbf16, #tpu.memory_space<vmem>>, vector<64x128xbf16>
    %cst = arith.constant dense<0.000000e+00> : vector<128x128xf32>
    %3 = tpu.matmul %1, %2, %cst {dimension_numbers = #tpu.dot_dimension_numbers<[1], [0], [0], [1], [0, 0, 1, 1], [], []>} : vector<128x64xbf16>, vector<64x128xbf16>, vector<128x128xf32> -> vector<128x128xf32>
    %c0_3 = arith.constant 0 : index
    %c0_4 = arith.constant 0 : index
    %4 = vector.load %arg3[%c0_3, %c0_4] : memref<1x128xf32, #tpu.memory_space<vmem>>, vector<1x128xf32>
    %5 = vector.broadcast %4 : vector<1x128xf32> to vector<128x128xf32>
    %6 = arith.addf %3, %5 : vector<128x128xf32>
    %cst_5 = arith.constant dense<0.000000e+00> : vector<128xf32>
    %7 = vector.multi_reduction <add>, %6, %cst_5 [1] : vector<128x128xf32> to vector<128xf32>
    %8 = vector.shape_cast %7 : vector<128xf32> to vector<128x1xf32>
    %cst_6 = arith.constant 1.280000e+02 : f32
    %9 = vector.broadcast %cst_6 : f32 to vector<128x1xf32>
    %10 = arith.divf %8, %9 : vector<128x1xf32>
    %11 = vector.broadcast %10 : vector<128x1xf32> to vector<128x128xf32>
    %12 = arith.subf %6, %11 : vector<128x128xf32>
    %13 = arith.mulf %12, %12 : vector<128x128xf32>
    %cst_7 = arith.constant dense<0.000000e+00> : vector<128xf32>
    %14 = vector.multi_reduction <add>, %13, %cst_7 [1] : vector<128x128xf32> to vector<128xf32>
    %15 = vector.shape_cast %14 : vector<128xf32> to vector<128x1xf32>
    %cst_8 = arith.constant 1.280000e+02 : f32
    %16 = vector.broadcast %cst_8 : f32 to vector<128x1xf32>
    %17 = arith.divf %15, %16 : vector<128x1xf32>
    %cst_9 = arith.constant 9.99999974E-6 : f32
    %18 = vector.broadcast %cst_9 : f32 to vector<128x1xf32>
    %19 = arith.addf %17, %18 : vector<128x1xf32>
    %20 = math.rsqrt %19 : vector<128x1xf32>
    %21 = vector.broadcast %20 : vector<128x1xf32> to vector<128x128xf32>
    %22 = arith.mulf %12, %21 : vector<128x128xf32>
    %c0_10 = arith.constant 0 : index
    %c0_11 = arith.constant 0 : index
    %23 = vector.load %arg4[%c0_10, %c0_11] : memref<1x128xf32, #tpu.memory_space<vmem>>, vector<1x128xf32>
    %24 = vector.broadcast %23 : vector<1x128xf32> to vector<128x128xf32>
    %25 = arith.mulf %22, %24 : vector<128x128xf32>
    %c0_12 = arith.constant 0 : index
    %c0_13 = arith.constant 0 : index
    %26 = vector.load %arg5[%c0_12, %c0_13] : memref<1x128xf32, #tpu.memory_space<vmem>>, vector<1x128xf32>
    %27 = vector.broadcast %26 : vector<1x128xf32> to vector<128x128xf32>
    %28 = arith.addf %25, %27 : vector<128x128xf32>
    %cst_14 = arith.constant 0.000000e+00 : f32
    %29 = vector.broadcast %cst_14 : f32 to vector<128x128xf32>
    %30 = arith.maximumf %28, %29 : vector<128x128xf32>
    %31 = arith.truncf %30 : vector<128x128xf32> to vector<128x128xbf16>
    %c0_15 = arith.constant 0 : index
    %c0_16 = arith.constant 0 : index
    %32 = vector.load %arg6[%c0_15, %c0_16] : memref<128x64xbf16, #tpu.memory_space<vmem>>, vector<128x64xbf16>
    %cst_17 = arith.constant dense<0.000000e+00> : vector<128x64xf32>
    %33 = tpu.matmul %31, %32, %cst_17 {dimension_numbers = #tpu.dot_dimension_numbers<[1], [0], [0], [1], [0, 0, 1, 1], [], []>} : vector<128x128xbf16>, vector<128x64xbf16>, vector<128x64xf32> -> vector<128x64xf32>
    %c0_18 = arith.constant 0 : index
    %c0_19 = arith.constant 0 : index
    %34 = vector.load %arg7[%c0_18, %c0_19] : memref<1x64xf32, #tpu.memory_space<vmem>>, vector<1x64xf32>
    %35 = vector.broadcast %34 : vector<1x64xf32> to vector<128x64xf32>
    %36 = arith.addf %33, %35 : vector<128x64xf32>
    %cst_20 = arith.constant 0.000000e+00 : f32
    %37 = vector.broadcast %cst_20 : f32 to vector<128x64xf32>
    %38 = arith.maximumf %36, %37 : vector<128x64xf32>
    %39 = arith.truncf %38 : vector<128x64xf32> to vector<128x64xbf16>
    %c0_21 = arith.constant 0 : index
    %c0_22 = arith.constant 0 : index
    %40 = vector.load %arg8[%c0_21, %c0_22] : memref<64x4xbf16, #tpu.memory_space<vmem>>, vector<64x4xbf16>
    %cst_23 = arith.constant dense<0.000000e+00> : vector<128x4xf32>
    %41 = tpu.matmul %39, %40, %cst_23 {dimension_numbers = #tpu.dot_dimension_numbers<[1], [0], [0], [1], [0, 0, 1, 1], [], []>} : vector<128x64xbf16>, vector<64x4xbf16>, vector<128x4xf32> -> vector<128x4xf32>
    %c0_24 = arith.constant 0 : index
    %c0_25 = arith.constant 0 : index
    %42 = vector.load %arg9[%c0_24, %c0_25] : memref<1x4xf32, #tpu.memory_space<vmem>>, vector<1x4xf32>
    %43 = vector.broadcast %42 : vector<1x4xf32> to vector<128x4xf32>
    %44 = arith.addf %41, %43 : vector<128x4xf32>
    %45 = tpu.iota {dimensions = array<i32: 1>} : vector<128x4xi32>
    %c0_i32 = arith.constant 0 : i32
    %46 = vector.broadcast %c0_i32 : i32 to vector<128x4xi32>
    %47 = arith.cmpi eq, %45, %46 : vector<128x4xi32>
    %c1_i32 = arith.constant 1 : i32
    %48 = vector.broadcast %c1_i32 : i32 to vector<128x4xi32>
    %49 = arith.cmpi eq, %45, %48 : vector<128x4xi32>
    %cst_26 = arith.constant 5.000000e-01 : f32
    %cst_27 = arith.constant 1.000000e+00 : f32
    %50 = vector.broadcast %cst_26 : f32 to vector<128x4xf32>
    %51 = vector.broadcast %cst_27 : f32 to vector<128x4xf32>
    %52 = arith.select %49, %50, %51 : vector<128x4xi1>, vector<128x4xf32>
    %cst_28 = arith.constant 2.000000e-01 : f32
    %53 = vector.broadcast %cst_28 : f32 to vector<128x4xf32>
    %54 = arith.select %47, %53, %52 : vector<128x4xi1>, vector<128x4xf32>
    %55 = arith.negf %44 : vector<128x4xf32>
    %56 = math.exp %55 : vector<128x4xf32>
    %cst_29 = arith.constant 1.000000e+00 : f32
    %57 = vector.broadcast %cst_29 : f32 to vector<128x4xf32>
    %58 = arith.addf %57, %56 : vector<128x4xf32>
    %59 = arith.divf %57, %58 : vector<128x4xf32>
    %60 = arith.mulf %59, %54 : vector<128x4xf32>
    %c0_30 = arith.constant 0 : index
    %c0_31 = arith.constant 0 : index
    %61 = vector.load %arg10[%c0_30, %c0_31] : memref<128x4xf32, #tpu.memory_space<vmem>>, vector<128x4xf32>
    tpu.vector_store %arg10[%c0_30, %c0_31], %60 {strides = array<i32>} : memref<128x4xf32, #tpu.memory_space<vmem>>, vector<128x4xf32>,
    return
  }
  func.func @transform_0(%arg0: i32) -> (i32, i32) {
    %c0_i32 = arith.constant 0 : i32
    %c0_i32_0 = arith.constant 0 : i32
    return %arg0, %c0_i32 : i32, i32
  }
  func.func @transform_1(%arg0: i32) -> (i32, i32) {
    %c0_i32 = arith.constant 0 : i32
    %c0_i32_0 = arith.constant 0 : i32
    %c0_i32_1 = arith.constant 0 : i32
    return %c0_i32, %c0_i32_0 : i32, i32
  }
  func.func @transform_2(%arg0: i32) -> (i32, i32) {
    %c0_i32 = arith.constant 0 : i32
    %c0_i32_0 = arith.constant 0 : i32
    %c0_i32_1 = arith.constant 0 : i32
    return %c0_i32, %c0_i32_0 : i32, i32
  }
  func.func @transform_3(%arg0: i32) -> (i32, i32) {
    %c0_i32 = arith.constant 0 : i32
    %c0_i32_0 = arith.constant 0 : i32
    %c0_i32_1 = arith.constant 0 : i32
    return %c0_i32, %c0_i32_0 : i32, i32
  }
  func.func @transform_4(%arg0: i32) -> (i32, i32) {
    %c0_i32 = arith.constant 0 : i32
    %c0_i32_0 = arith.constant 0 : i32
    %c0_i32_1 = arith.constant 0 : i32
    return %c0_i32, %c0_i32_0 : i32, i32
  }
  func.func @transform_5(%arg0: i32) -> (i32, i32) {
    %c0_i32 = arith.constant 0 : i32
    %c0_i32_0 = arith.constant 0 : i32
    %c0_i32_1 = arith.constant 0 : i32
    return %c0_i32, %c0_i32_0 : i32, i32
  }
  func.func @transform_6(%arg0: i32) -> (i32, i32) {
    %c0_i32 = arith.constant 0 : i32
    %c0_i32_0 = arith.constant 0 : i32
    %c0_i32_1 = arith.constant 0 : i32
    return %c0_i32, %c0_i32_0 : i32, i32
  }
  func.func @transform_7(%arg0: i32) -> (i32, i32) {
    %c0_i32 = arith.constant 0 : i32
    %c0_i32_0 = arith.constant 0 : i32
    %c0_i32_1 = arith.constant 0 : i32
    return %c0_i32, %c0_i32_0 : i32, i32
  }
  func.func @transform_8(%arg0: i32) -> (i32, i32) {
    %c0_i32 = arith.constant 0 : i32
    %c0_i32_0 = arith.constant 0 : i32
    %c0_i32_1 = arith.constant 0 : i32
    return %c0_i32, %c0_i32_0 : i32, i32
  }
  func.func @transform_9(%arg0: i32) -> (i32, i32) {
    %c0_i32 = arith.constant 0 : i32
    %c0_i32_0 = arith.constant 0 : i32
    return %arg0, %c0_i32 : i32, i32
  }
}

</mosaic_0001>

<llo_original>
// kernel: risk_management_head.1
$region0: #{risk_management_head.1}
  #allocation0 [shape = 'u32[]', space=smem, size = 0x4, offset = 0x4, fixed_abs, tag = 'smem constant byte address 0x4 - core index']
  #allocation1 [shape = 'u32[144,128]{1,0:T(1,128)}', space=vmem, size = 0x12000, scoped, tag = 'internal scratch']
  %s0 = inlined_call_operand.vmem [shape: f32[256,64], index: 0, kind: input, shape index: {}]
  %s1 = inlined_call_operand.vmem [shape: bf16[64,128], index: 1, kind: input, shape index: {}]
  %s2 = inlined_call_operand.vmem [shape: f32[1,128], index: 2, kind: input, shape index: {}]
  %s3 = inlined_call_operand.vmem [shape: f32[1,128], index: 3, kind: input, shape index: {}]
  %s4 = inlined_call_operand.vmem [shape: f32[1,128], index: 4, kind: input, shape index: {}]
  %s5 = inlined_call_operand.vmem [shape: bf16[128,64], index: 5, kind: input, shape index: {}]
  %s6 = inlined_call_operand.vmem [shape: f32[1,64], index: 6, kind: input, shape index: {}]
  %s7 = inlined_call_operand.vmem [shape: bf16[64,4], index: 7, kind: input, shape index: {}]
  %s8 = inlined_call_operand.vmem [shape: f32[1,4], index: 8, kind: input, shape index: {}]
  %s9 = inlined_call_operand.vmem [shape: f32[256,4], index: 9, kind: output, shape index: {}]
  %s10 = sld [smem:[#allocation0]]
  $region69: #{risk_management_head.1} parent=0
    _
  %s12 = ssub.s32 1, %s10
  %s13 = scalar_select 0, %s12, %s10
  loop: start=0, step=1, limit=4
  $region2: #{risk_management_head.1} parent=0 // loop_pre_header
    _
  $region3: #{risk_management_head.1} parent=0 // loop_header
    %s15 = sphi 0, %s19
    %p16 = scmp.ge.s32.totalorder %s15, 4
    %s25 = sphi 0, %s27
    %s28 = sphi 0, %s25
    %s29 = sphi 0, %s28
    %s45 = sphi 0, %s29
    %s49 = sphi 0, %s49
    %s51 = sphi 0, %s49
    %s52 = sphi 0, %s51
    %s66 = sphi 0, %s52
    %s70 = sphi 0, %s70
    %s72 = sphi 0, %s70
    %s73 = sphi 0, %s72
    %s87 = sphi 0, %s73
    %s91 = sphi 0, %s91
    %s93 = sphi 0, %s91
    %s94 = sphi 0, %s93
    %s108 = sphi 0, %s94
    %s112 = sphi 0, %s112
    %s114 = sphi 0, %s112
    %s115 = sphi 0, %s114
    %s129 = sphi 0, %s115
    %s133 = sphi 0, %s133
    %s135 = sphi 0, %s133
    %s136 = sphi 0, %s135
    %s150 = sphi 0, %s136
    %s154 = sphi 0, %s154
    %s156 = sphi 0, %s154
    %s157 = sphi 0, %s156
    %s171 = sphi 0, %s157
    %s175 = sphi 0, %s175
    %s177 = sphi 0, %s175
    %s178 = sphi 0, %s177
    %s192 = sphi 0, %s178
    %s196 = sphi 0, %s196
    %s198 = sphi 0, %s196
    %s199 = sphi 0, %s198
    %s213 = sphi 0, %s199
    %s219 = sphi 0, %s221
    %s222 = sphi 0, %s219
    %s223 = sphi 0, %s222
    %s239 = sphi 0, %s223
  $region4: #{risk_management_head.1} parent=0 // loop_header_branch
    %18 = sbr.rel (%p16) target = $region8
  $region5: #{risk_management_head.1} parent=0 // loop_body
    %s20 = ssub.s32 %s15, 1
    %s21 = ssub.s32 %s15, 2
    %s22 = sadd.s32 %s15, 1
    %s23 = ssub.s32 %s15, %s22
    %p24 = scmp.eq.s32.totalorder %s23, 0
    %s26 = sadd.s32 %s25, 1
    %s27 = scalar_select %p24, %s25, %s26
    %p30 = pneg %p24
    %p31 = scmp.eq.s32.totalorder %s15, 1
    %p32 = por %p30, %p31
    %p33 = scmp.ne.s32.totalorder %s25, %s28
    %p34 = scmp.eq.s32.totalorder %s15, 0
    %p35 = por %p33, %p34
    %p36 = scmp.ne.s32.totalorder %s25, %s28
    %p37 = scmp.eq.s32.totalorder %s20, 1
    %p38 = por %p36, %p37
    %p39 = scmp.ne.s32.totalorder %s28, %s29
    %p40 = scmp.eq.s32.totalorder %s20, 0
    %p41 = por %p39, %p40
    %p42 = scmp.ne.s32.totalorder %s28, %s29
    %p43 = scmp.eq.s32.totalorder %s21, 1
    %p44 = por %p42, %p43
    %p46 = scmp.ne.s32.totalorder %s29, %s45
    %p47 = scmp.eq.s32.totalorder %s21, 0
    %p48 = por %p46, %p47
    %s50 = sadd.s32 %s49, 1
    %p53 = scmp.eq.s32.totalorder %s15, 1
    %p54 = scmp.ne.s32.totalorder %s49, %s51
    %p55 = scmp.eq.s32.totalorder %s15, 0
    %p56 = por %p54, %p55
    %p57 = scmp.ne.s32.totalorder %s49, %s51
    %p58 = scmp.eq.s32.totalorder %s20, 1
    %p59 = por %p57, %p58
    %p60 = scmp.ne.s32.totalorder %s51, %s52
    %p61 = scmp.eq.s32.totalorder %s20, 0
    %p62 = por %p60, %p61
    %p63 = scmp.ne.s32.totalorder %s51, %s52
    %p64 = scmp.eq.s32.totalorder %s21, 1
    %p65 = por %p63, %p64
    %p67 = scmp.ne.s32.totalorder %s52, %s66
    %p68 = scmp.eq.s32.totalorder %s21, 0
    %p69 = por %p67, %p68
    %s71 = sadd.s32 %s70, 1
    %p74 = scmp.eq.s32.totalorder %s15, 1
    %p75 = scmp.ne.s32.totalorder %s70, %s72
    %p76 = scmp.eq.s32.totalorder %s15, 0
    %p77 = por %p75, %p76
    %p78 = scmp.ne.s32.totalorder %s70, %s72
    %p79 = scmp.eq.s32.totalorder %s20, 1
    %p80 = por %p78, %p79
    %p81 = scmp.ne.s32.totalorder %s72, %s73
    %p82 = scmp.eq.s32.totalorder %s20, 0
    %p83 = por %p81, %p82
    %p84 = scmp.ne.s32.totalorder %s72, %s73
    %p85 = scmp.eq.s32.totalorder %s21, 1
    %p86 = por %p84, %p85
    %p88 = scmp.ne.s32.totalorder %s73, %s87
    %p89 = scmp.eq.s32.totalorder %s21, 0
    %p90 = por %p88, %p89
    %s92 = sadd.s32 %s91, 1
    %p95 = scmp.eq.s32.totalorder %s15, 1
    %p96 = scmp.ne.s32.totalorder %s91, %s93
    %p97 = scmp.eq.s32.totalorder %s15, 0
    %p98 = por %p96, %p97
    %p99 = scmp.ne.s32.totalorder %s91, %s93
    %p100 = scmp.eq.s32.totalorder %s20, 1
    %p101 = por %p99, %p100
    %p102 = scmp.ne.s32.totalorder %s93, %s94
    %p103 = scmp.eq.s32.totalorder %s20, 0
    %p104 = por %p102, %p103
    %p105 = scmp.ne.s32.totalorder %s93, %s94
    %p106 = scmp.eq.s32.totalorder %s21, 1
    %p107 = por %p105, %p106
    %p109 = scmp.ne.s32.totalorder %s94, %s108
    %p110 = scmp.eq.s32.totalorder %s21, 0
    %p111 = por %p109, %p110
    %s113 = sadd.s32 %s112, 1
    %p116 = scmp.eq.s32.totalorder %s15, 1
    %p117 = scmp.ne.s32.totalorder %s112, %s114
    %p118 = scmp.eq.s32.totalorder %s15, 0
    %p119 = por %p117, %p118
    %p120 = scmp.ne.s32.totalorder %s112, %s114
    %p121 = scmp.eq.s32.totalorder %s20, 1
    %p122 = por %p120, %p121
    %p123 = scmp.ne.s32.totalorder %s114, %s115
    %p124 = scmp.eq.s32.totalorder %s20, 0
    %p125 = por %p123, %p124
    %p126 = scmp.ne.s32.totalorder %s114, %s115
    %p127 = scmp.eq.s32.totalorder %s21, 1
    %p128 = por %p126, %p127
    %p130 = scmp.ne.s32.totalorder %s115, %s129
    %p131 = scmp.eq.s32.totalorder %s21, 0
    %p132 = por %p130, %p131
    %s134 = sadd.s32 %s133, 1
    %p137 = scmp.eq.s32.totalorder %s15, 1
    %p138 = scmp.ne.s32.totalorder %s133, %s135
    %p139 = scmp.eq.s32.totalorder %s15, 0
    %p140 = por %p138, %p139
    %p141 = scmp.ne.s32.totalorder %s133, %s135
    %p142 = scmp.eq.s32.totalorder %s20, 1
    %p143 = por %p141, %p142
    %p144 = scmp.ne.s32.totalorder %s135, %s136
    %p145 = scmp.eq.s32.totalorder %s20, 0
    %p146 = por %p144, %p145
    %p147 = scmp.ne.s32.totalorder %s135, %s136
    %p148 = scmp.eq.s32.totalorder %s21, 1
    %p149 = por %p147, %p148
    %p151 = scmp.ne.s32.totalorder %s136, %s150
    %p152 = scmp.eq.s32.totalorder %s21, 0
    %p153 = por %p151, %p152
    %s155 = sadd.s32 %s154, 1
    %p158 = scmp.eq.s32.totalorder %s15, 1
    %p159 = scmp.ne.s32.totalorder %s154, %s156
    %p160 = scmp.eq.s32.totalorder %s15, 0
    %p161 = por %p159, %p160
    %p162 = scmp.ne.s32.totalorder %s154, %s156
    %p163 = scmp.eq.s32.totalorder %s20, 1
    %p164 = por %p162, %p163
    %p165 = scmp.ne.s32.totalorder %s156, %s157
    %p166 = scmp.eq.s32.totalorder %s20, 0
    %p167 = por %p165, %p166
    %p168 = scmp.ne.s32.totalorder %s156, %s157
    %p169 = scmp.eq.s32.totalorder %s21, 1
    %p170 = por %p168, %p169
    %p172 = scmp.ne.s32.totalorder %s157, %s171
    %p173 = scmp.eq.s32.totalorder %s21, 0
    %p174 = por %p172, %p173
    %s176 = sadd.s32 %s175, 1
    %p179 = scmp.eq.s32.totalorder %s15, 1
    %p180 = scmp.ne.s32.totalorder %s175, %s177
    %p181 = scmp.eq.s32.totalorder %s15, 0
    %p182 = por %p180, %p181
    %p183 = scmp.ne.s32.totalorder %s175, %s177
    %p184 = scmp.eq.s32.totalorder %s20, 1
    %p185 = por %p183, %p184
    %p186 = scmp.ne.s32.totalorder %s177, %s178
    %p187 = scmp.eq.s32.totalorder %s20, 0
    %p188 = por %p186, %p187
    %p189 = scmp.ne.s32.totalorder %s177, %s178
    %p190 = scmp.eq.s32.totalorder %s21, 1
    %p191 = por %p189, %p190
    %p193 = scmp.ne.s32.totalorder %s178, %s192
    %p194 = scmp.eq.s32.totalorder %s21, 0
    %p195 = por %p193, %p194
    %s197 = sadd.s32 %s196, 1
    %p200 = scmp.eq.s32.totalorder %s15, 1
    %p201 = scmp.ne.s32.totalorder %s196, %s198
    %p202 = scmp.eq.s32.totalorder %s15, 0
    %p203 = por %p201, %p202
    %p204 = scmp.ne.s32.totalorder %s196, %s198
    %p205 = scmp.eq.s32.totalorder %s20, 1
    %p206 = por %p204, %p205
    %p207 = scmp.ne.s32.totalorder %s198, %s199
    %p208 = scmp.eq.s32.totalorder %s20, 0
    %p209 = por %p207, %p208
    %p210 = scmp.ne.s32.totalorder %s198, %s199
    %p211 = scmp.eq.s32.totalorder %s21, 1
    %p212 = por %p210, %p211
    %p214 = scmp.ne.s32.totalorder %s199, %s213
    %p215 = scmp.eq.s32.totalorder %s21, 0
    %p216 = por %p214, %p215
    %s217 = ssub.s32 %s15, %s22
    %p218 = scmp.eq.s32.totalorder %s217, 0
    %s220 = sadd.s32 %s219, 1
    %s221 = scalar_select %p218, %s219, %s220
    %p224 = pneg %p218
    %p225 = scmp.eq.s32.totalorder %s15, 1
    %p226 = por %p224, %p225
    %p227 = scmp.ne.s32.totalorder %s219, %s222
    %p228 = scmp.eq.s32.totalorder %s15, 0
    %p229 = por %p227, %p228
    %p230 = scmp.ne.s32.totalorder %s219, %s222
    %p231 = scmp.eq.s32.totalorder %s20, 1
    %p232 = por %p230, %p231
    %p233 = scmp.ne.s32.totalorder %s222, %s223
    %p234 = scmp.eq.s32.totalorder %s20, 0
    %p235 = por %p233, %p234
    %p236 = scmp.ne.s32.totalorder %s222, %s223
    %p237 = scmp.eq.s32.totalorder %s21, 1
    %p238 = por %p236, %p237
    %p240 = scmp.ne.s32.totalorder %s223, %s239
    %p241 = scmp.eq.s32.totalorder %s21, 0
    %p242 = por %p240, %p241
    %p243 = scmp.le.s32.totalorder 1, %s15
    %p244 = scmp.lt.s32.totalorder %s15, 3
    %p245 = pnand %p243, %p244
    %p246 = pneg %p245
    // Predicated region
    $region9: #{risk_management_head.1} parent=5 // pred_check
      _
    $region10: #{risk_management_head.1} parent=5 // pred_check_branch
      %248 = sbr.rel (%p245) target = $region12
    $region11: #{risk_management_head.1} parent=5 // pred_region
      %s249 = ssub.s32 %s15, 1
      // Predicated region
      $region13: #{risk_management_head.1} parent=11 // pred_check
        %p250 = pneg %p62
      $region14: #{risk_management_head.1} parent=11 // pred_check_branch
        %252 = sbr.rel (%p250) target = $region16
      $region15: #{risk_management_head.1} parent=11 // pred_region
        _
      $region16: #{risk_management_head.1} parent=11 // pred_fallthru
        _
      // Predicated region
      $region17: #{risk_management_head.1} parent=11 // pred_check
        %p253 = pneg %p83
      $region18: #{risk_management_head.1} parent=11 // pred_check_branch
        %255 = sbr.rel (%p253) target = $region20
      $region19: #{risk_management_head.1} parent=11 // pred_region
        _
      $region20: #{risk_management_head.1} parent=11 // pred_fallthru
        _
      // Predicated region
      $region21: #{risk_management_head.1} parent=11 // pred_check
        %p256 = pneg %p104
      $region22: #{risk_management_head.1} parent=11 // pred_check_branch
        %258 = sbr.rel (%p256) target = $region24
      $region23: #{risk_management_head.1} parent=11 // pred_region
        _
      $region24: #{risk_management_head.1} parent=11 // pred_fallthru
        _
      // Predicated region
      $region25: #{risk_management_head.1} parent=11 // pred_check
        %p259 = pneg %p125
      $region26: #{risk_management_head.1} parent=11 // pred_check_branch
        %261 = sbr.rel (%p259) target = $region28
      $region27: #{risk_management_head.1} parent=11 // pred_region
        _
      $region28: #{risk_management_head.1} parent=11 // pred_fallthru
        _
      // Predicated region
      $region29: #{risk_management_head.1} parent=11 // pred_check
        %p262 = pneg %p146
      $region30: #{risk_management_head.1} parent=11 // pred_check_branch
        %264 = sbr.rel (%p262) target = $region32
      $region31: #{risk_management_head.1} parent=11 // pred_region
        _
      $region32: #{risk_management_head.1} parent=11 // pred_fallthru
        _
      // Predicated region
      $region33: #{risk_management_head.1} parent=11 // pred_check
        %p265 = pneg %p167
      $region34: #{risk_management_head.1} parent=11 // pred_check_branch
        %267 = sbr.rel (%p265) target = $region36
      $region35: #{risk_management_head.1} parent=11 // pred_region
        _
      $region36: #{risk_management_head.1} parent=11 // pred_fallthru
        _
      // Predicated region
      $region37: #{risk_management_head.1} parent=11 // pred_check
        %p268 = pneg %p188
      $region38: #{risk_management_head.1} parent=11 // pred_check_branch
        %270 = sbr.rel (%p268) target = $region40
      $region39: #{risk_management_head.1} parent=11 // pred_region
        _
      $region40: #{risk_management_head.1} parent=11 // pred_fallthru
        _
      // Predicated region
      $region41: #{risk_management_head.1} parent=11 // pred_check
        %p271 = pneg %p209
      $region42: #{risk_management_head.1} parent=11 // pred_check_branch
        %273 = sbr.rel (%p271) target = $region44
      $region43: #{risk_management_head.1} parent=11 // pred_region
        _
      $region44: #{risk_management_head.1} parent=11 // pred_fallthru
        _
    $region12: #{risk_management_head.1} parent=5 // pred_fallthru
      _
    %p274 = scmp.lt.s32.totalorder %s15, 2
    // Predicated region
    $region45: #{risk_management_head.1} parent=5 // pred_check
      %p275 = pneg %p274
    $region46: #{risk_management_head.1} parent=5 // pred_check_branch
      %277 = sbr.rel (%p275) target = $region48
    $region47: #{risk_management_head.1} parent=5 // pred_region
      // Predicated region
      $region49: #{risk_management_head.1} parent=47 // pred_check
        %p278 = pneg %p35
      $region50: #{risk_management_head.1} parent=47 // pred_check_branch
        %280 = sbr.rel (%p278) target = $region52
      $region51: #{risk_management_head.1} parent=47 // pred_region
        %s281 = smul.u32 16, %s15
        %p282 = scmp.lt.s32.totalorder %s281, 31
        %s283 = scalar_select %p282, %s281, 31
        %s284 = smul.addr %s283, 8
        %s285 = scalar_lea.vmem %s0, %s284
        %s286 = smul.u32 16, %s15
      $region52: #{risk_management_head.1} parent=47 // pred_fallthru
        _
    $region48: #{risk_management_head.1} parent=5 // pred_fallthru
      _
    %p287 = scmp.le.s32.totalorder 1, %s15
    %p288 = scmp.lt.s32.totalorder %s15, 3
    %p289 = pnand %p287, %p288
    %p290 = pneg %p289
    // Predicated region
    $region53: #{risk_management_head.1} parent=5 // pred_check
      _
    $region54: #{risk_management_head.1} parent=5 // pred_check_branch
      %292 = sbr.rel (%p289) target = $region56
    $region55: #{risk_management_head.1} parent=5 // pred_region
      %s293 = ssub.s32 %s15, 1
      %s294 = smul.u32 16, %s20
      %p295 = scmp.lt.s32.totalorder %s294, 31
      %s296 = scalar_select %p295, %s294, 31
      %s297 = smul.addr %s296, 8
      %s298 = scalar_lea.vmem %s0, %s297
      %p299 = pneg %p41
      %p300 = pneg %p38
      %p301 = pneg %p62
      %p302 = pneg %p59
      %p303 = pneg %p83
      %p304 = pneg %p80
      %p305 = pneg %p104
      %p306 = pneg %p101
      %p307 = pneg %p125
      %p308 = pneg %p122
      %p309 = pneg %p146
      %p310 = pneg %p143
      %p311 = pneg %p167
      %p312 = pneg %p164
      %p313 = pneg %p188
      %p314 = pneg %p185
      %p315 = pneg %p209
      %p316 = pneg %p206
      %p317 = pneg %p235
      %p318 = pneg %p232
      %s319 = smul.u32 16, %s20
      %p320 = scmp.lt.s32.totalorder %s319, 31
      %s321 = scalar_select %p320, %s319, 31
      %s322 = smul.addr %s321, 8
      %s323 = scalar_lea.vmem %s9, %s322
      %s324 = smul.u32 16, %s20
      %p325 = scmp.lt.s32.totalorder %s324, 31
      %s326 = scalar_select %p325, %s324, 31
      %s327 = smul.addr %s326, 8
      %s328 = scalar_lea.vmem %s0, %s327
      %s329 = smul.u32 16, %s20
      %s330 = smul.u32 16, %s20
      %p331 = scmp.lt.s32.totalorder %s330, 31
      %s332 = scalar_select %p331, %s330, 31
      %s333 = smul.addr %s332, 8
      %s334 = scalar_lea.vmem %s9, %s333
      %s335 = smul.u32 16, %s20
      %v337 = vld [vmem:[%s328] sm:$0xff]
      %v338 = vld [vmem:[%s328 + $0x8] sm:$0xff]
      %v339 = vld [vmem:[%s328 + $0x10] sm:$0xff]
      %v340 = vld [vmem:[%s328 + $0x18] sm:$0xff]
      %v341 = vld [vmem:[%s328 + $0x20] sm:$0xff]
      %v342 = vld [vmem:[%s328 + $0x28] sm:$0xff]
      %v343 = vld [vmem:[%s328 + $0x30] sm:$0xff]
      %v344 = vld [vmem:[%s328 + $0x38] sm:$0xff]
      %v345 = vld [vmem:[%s328 + $0x40] sm:$0xff]
      %v346 = vld [vmem:[%s328 + $0x48] sm:$0xff]
      %v347 = vld [vmem:[%s328 + $0x50] sm:$0xff]
      %v348 = vld [vmem:[%s328 + $0x58] sm:$0xff]
      %v349 = vld [vmem:[%s328 + $0x60] sm:$0xff]
      %v350 = vld [vmem:[%s328 + $0x68] sm:$0xff]
      %v351 = vld [vmem:[%s328 + $0x70] sm:$0xff]
      %v352 = vld [vmem:[%s328 + $0x78] sm:$0xff]
      %v353 = vpack.c.bf16 %v338, %v337
      %v354 = vpack.c.bf16 %v340, %v339
      %v355 = vpack.c.bf16 %v342, %v341
      %v356 = vpack.c.bf16 %v344, %v343
      %v357 = vpack.c.bf16 %v346, %v345
      %v358 = vpack.c.bf16 %v348, %v347
      %v359 = vpack.c.bf16 %v350, %v349
      %v360 = vpack.c.bf16 %v352, %v351
      %v361 = vld [vmem:[%s1] sm:$0xf]
      %v362 = vld [vmem:[%s1 + $0x4] sm:$0xf]
      %v363 = vld [vmem:[%s1 + $0x8] sm:$0xf]
      %v364 = vld [vmem:[%s1 + $0xc] sm:$0xf]
      %v365 = vld [vmem:[%s1 + $0x10] sm:$0xf]
      %v366 = vld [vmem:[%s1 + $0x14] sm:$0xf]
      %v367 = vld [vmem:[%s1 + $0x18] sm:$0xf]
      %v368 = vld [vmem:[%s1 + $0x1c] sm:$0xf]
      %v369 = vld [vmem:[%s2] sm:$0x1]
      %v371 = vlaneseq
      %v372 = vshrl.u32 %v371, 7
      %v373 = vsub.s32 0, %v372
      %v374 = vrot.slane %v369, %v373
      %v384 = vunpack.c.l.b16 %v361
      %v385 = vunpack.c.l.b16 %v362
      %v386 = vunpack.c.l.b16 %v363
      %v387 = vunpack.c.l.b16 %v364
      %v388 = vunpack.c.l.b16 %v365
      %v389 = vunpack.c.l.b16 %v366
      %v390 = vunpack.c.l.b16 %v367
      %v391 = vunpack.c.l.b16 %v368
      %v392 = vpack.c.b16 %v385, %v384
      %v393 = vpack.c.b16 %v387, %v386
      %v394 = vpack.c.b16 %v389, %v388
      %v395 = vpack.c.b16 %v391, %v390
      %vm400 = vcmask 523264
      %v402 = vsel %vm400, %v353, 0
      %v405 = vsel %vm400, %v354, 0
      %v408 = vsel %vm400, %v355, 0
      %v411 = vsel %vm400, %v356, 0
      %v414 = vsel %vm400, %v357, 0
      %v417 = vsel %vm400, %v358, 0
      %v420 = vsel %vm400, %v359, 0
      %v423 = vsel %vm400, %v360, 0
      %425 = vmatprep.subr.bf16.mxu0 0
      %426 = vmatpush1.bf16.msra.mxu0 %v392
      %427 = vmatprep.subr.bf16.mxu0 0
      %428 = vmatpush1.bf16.msra.mxu0 %v393
      %429 = vmatprep.subr.bf16.mxu0 0
      %430 = vmatpush1.bf16.msra.mxu0 %v394
      %431 = vmatprep.subr.bf16.mxu0 0
      %432 = vmatpush1.bf16.msra.mxu0 %v395
      %433 = vmatprep.subr.bf16.mxu0 0
      %434 = vmatpush1.bf16.msra.mxu0 0
      %435 = vmatprep.subr.bf16.mxu0 0
      %436 = vmatpush1.bf16.msra.mxu0 0
      %437 = vmatprep.subr.bf16.mxu0 0
      %438 = vmatpush1.bf16.msra.mxu0 0
      %439 = vmatprep.subr.bf16.mxu0 0
      %440 = vmatpush1.bf16.msra.mxu0 0
      %441 = vmatprep.subr.bf16.mxu0 0
      %442 = vmatpush1.bf16.msra.mxu0 0
      %443 = vmatprep.subr.bf16.mxu0 0
      %444 = vmatpush1.bf16.msra.mxu0 0
      %445 = vmatprep.subr.bf16.mxu0 0
      %446 = vmatpush1.bf16.msra.mxu0 0
      %447 = vmatprep.subr.bf16.mxu0 0
      %448 = vmatpush1.bf16.msra.mxu0 0
      %449 = vmatprep.subr.bf16.mxu0 0
      %450 = vmatpush1.bf16.msra.mxu0 0
      %451 = vmatprep.subr.bf16.mxu0 0
      %452 = vmatpush1.bf16.msra.mxu0 0
      %453 = vmatprep.subr.bf16.mxu0 0
      %454 = vmatpush1.bf16.msra.mxu0 0
      %455 = vmatprep.subr.bf16.mxu0 0
      %456 = vmatpush1.bf16.msra.mxu0 0
      %457 = vmatprep.mubr.bf16.mxu0 0
      %458 = vmatmul.mubr.bf16.gmra.mrb[0].mxu0 %v402
      %v459 = vpop.f32.mrb[0].mxu0
      %v460 = vadd.f32 %v374, %v459
      %v461 = vpop.f32.mrb[0].mxu0
      %v462 = vpop.f32.mrb[0].mxu0
      %v463 = vadd.f32 %v374, %v462
      %v464 = vpop.f32.mrb[0].mxu0
      %465 = vmatprep.mubr.bf16.mxu0 0
      %466 = vmatmul.mubr.bf16.gmra.mrb[0].mxu0 %v405
      %v467 = vpop.f32.mrb[0].mxu0
      %v468 = vadd.f32 %v374, %v467
      %v469 = vpop.f32.mrb[0].mxu0
      %v470 = vpop.f32.mrb[0].mxu0
      %v471 = vadd.f32 %v374, %v470
      %v472 = vpop.f32.mrb[0].mxu0
      %473 = vmatprep.mubr.bf16.mxu0 0
      %474 = vmatmul.mubr.bf16.gmra.mrb[0].mxu0 %v408
      %v475 = vpop.f32.mrb[0].mxu0
      %v476 = vadd.f32 %v374, %v475
      %v477 = vpop.f32.mrb[0].mxu0
      %v478 = vpop.f32.mrb[0].mxu0
      %v479 = vadd.f32 %v374, %v478
      %v480 = vpop.f32.mrb[0].mxu0
      %481 = vmatprep.mubr.bf16.mxu0 0
      %482 = vmatmul.mubr.bf16.gmra.mrb[0].mxu0 %v411
      %v483 = vpop.f32.mrb[0].mxu0
      %v484 = vadd.f32 %v374, %v483
      %v485 = vpop.f32.mrb[0].mxu0
      %v486 = vpop.f32.mrb[0].mxu0
      %v487 = vadd.f32 %v374, %v486
      %v488 = vpop.f32.mrb[0].mxu0
      %489 = vmatprep.mubr.bf16.mxu0 0
      %490 = vmatmul.mubr.bf16.gmra.mrb[0].mxu0 %v414
      %v491 = vpop.f32.mrb[0].mxu0
      %v492 = vadd.f32 %v374, %v491
      %v493 = vpop.f32.mrb[0].mxu0
      %v494 = vpop.f32.mrb[0].mxu0
      %v495 = vadd.f32 %v374, %v494
      %v496 = vpop.f32.mrb[0].mxu0
      %497 = vmatprep.mubr.bf16.mxu0 0
      %498 = vmatmul.mubr.bf16.gmra.mrb[0].mxu0 %v417
      %v499 = vpop.f32.mrb[0].mxu0
      %v500 = vadd.f32 %v374, %v499
      %v501 = vpop.f32.mrb[0].mxu0
      %v502 = vpop.f32.mrb[0].mxu0
      %v503 = vadd.f32 %v374, %v502
      %v504 = vpop.f32.mrb[0].mxu0
      %505 = vmatprep.mubr.bf16.mxu0 0
      %506 = vmatmul.mubr.bf16.gmra.mrb[0].mxu0 %v420
      %v507 = vpop.f32.mrb[0].mxu0
      %v508 = vadd.f32 %v374, %v507
      %v509 = vpop.f32.mrb[0].mxu0
      %v510 = vpop.f32.mrb[0].mxu0
      %v511 = vadd.f32 %v374, %v510
      %v512 = vpop.f32.mrb[0].mxu0
      %513 = vmatprep.mubr.bf16.mxu0 0
      %514 = vmatmul.mubr.bf16.gmra.mrb[0].mxu0 %v423
      %v515 = vpop.f32.mrb[0].mxu0
      %v516 = vadd.f32 %v374, %v515
      %v517 = vpop.f32.mrb[0].mxu0
      %v518 = vpop.f32.mrb[0].mxu0
      %v519 = vadd.f32 %v374, %v518
      %v520 = vpop.f32.mrb[0].mxu0
      %521 = vdwg.mxu0
      %522 = vadd.xlane.f32.xlu0 %v460
      %v523 = vpop.xlane.xlu0 %522
      %524 = vadd.xlane.f32.xlu0 %v463
      %v525 = vpop.xlane.xlu0 %524
      %526 = vadd.xlane.f32.xlu0 %v468
      %v527 = vpop.xlane.xlu0 %526
      %528 = vadd.xlane.f32.xlu0 %v471
      %v529 = vpop.xlane.xlu0 %528
      %530 = vadd.xlane.f32.xlu0 %v476
      %v531 = vpop.xlane.xlu0 %530
      %532 = vadd.xlane.f32.xlu0 %v479
      %v533 = vpop.xlane.xlu0 %532
      %534 = vadd.xlane.f32.xlu0 %v484
      %v535 = vpop.xlane.xlu0 %534
      %536 = vadd.xlane.f32.xlu0 %v487
      %v537 = vpop.xlane.xlu0 %536
      %538 = vadd.xlane.f32.xlu0 %v492
      %v539 = vpop.xlane.xlu0 %538
      %540 = vadd.xlane.f32.xlu0 %v495
      %v541 = vpop.xlane.xlu0 %540
      %542 = vadd.xlane.f32.xlu0 %v500
      %v543 = vpop.xlane.xlu0 %542
      %544 = vadd.xlane.f32.xlu0 %v503
      %v545 = vpop.xlane.xlu0 %544
      %546 = vadd.xlane.f32.xlu0 %v508
      %v547 = vpop.xlane.xlu0 %546
      %548 = vadd.xlane.f32.xlu0 %v511
      %v549 = vpop.xlane.xlu0 %548
      %550 = vadd.xlane.f32.xlu0 %v516
      %v551 = vpop.xlane.xlu0 %550
      %552 = vadd.xlane.f32.xlu0 %v519
      %v553 = vpop.xlane.xlu0 %552
      %v554 = vrcp.pop 128.0
      %v555 = vmul.f32 %v523, %v554
      %v556 = vmul.f32 %v525, %v554
      %v557 = vmul.f32 %v527, %v554
      %v558 = vmul.f32 %v529, %v554
      %v559 = vmul.f32 %v531, %v554
      %v560 = vmul.f32 %v533, %v554
      %v561 = vmul.f32 %v535, %v554
      %v562 = vmul.f32 %v537, %v554
      %v563 = vmul.f32 %v539, %v554
      %v564 = vmul.f32 %v541, %v554
      %v565 = vmul.f32 %v543, %v554
      %v566 = vmul.f32 %v545, %v554
      %v567 = vmul.f32 %v547, %v554
      %v568 = vmul.f32 %v549, %v554
      %v569 = vmul.f32 %v551, %v554
      %v570 = vmul.f32 %v553, %v554
      %v571 = vsub.f32 %v460, %v555
      %v572 = vsub.f32 %v463, %v556
      %v573 = vsub.f32 %v468, %v557
      %v574 = vsub.f32 %v471, %v558
      %v575 = vsub.f32 %v476, %v559
      %v576 = vsub.f32 %v479, %v560
      %v577 = vsub.f32 %v484, %v561
      %v578 = vsub.f32 %v487, %v562
      %v579 = vsub.f32 %v492, %v563
      %v580 = vsub.f32 %v495, %v564
      %v581 = vsub.f32 %v500, %v565
      %v582 = vsub.f32 %v503, %v566
      %v583 = vsub.f32 %v508, %v567
      %v584 = vsub.f32 %v511, %v568
      %v585 = vsub.f32 %v516, %v569
      %v586 = vsub.f32 %v519, %v570
      %v587 = vmul.f32 %v571, %v571
      %v588 = vmul.f32 %v572, %v572
      %v589 = vmul.f32 %v573, %v573
      %v590 = vmul.f32 %v574, %v574
      %v591 = vmul.f32 %v575, %v575
      %v592 = vmul.f32 %v576, %v576
      %v593 = vmul.f32 %v577, %v577
      %v594 = vmul.f32 %v578, %v578
      %v595 = vmul.f32 %v579, %v579
      %v596 = vmul.f32 %v580, %v580
      %v597 = vmul.f32 %v581, %v581
      %v598 = vmul.f32 %v582, %v582
      %v599 = vmul.f32 %v583, %v583
      %v600 = vmul.f32 %v584, %v584
      %v601 = vmul.f32 %v585, %v585
      %v602 = vmul.f32 %v586, %v586
      %603 = vadd.xlane.f32.xlu0 %v587
      %v604 = vpop.xlane.xlu0 %603
      %605 = vadd.xlane.f32.xlu0 %v588
      %v606 = vpop.xlane.xlu0 %605
      %607 = vadd.xlane.f32.xlu0 %v589
      %v608 = vpop.xlane.xlu0 %607
      %609 = vadd.xlane.f32.xlu0 %v590
      %v610 = vpop.xlane.xlu0 %609
      %611 = vadd.xlane.f32.xlu0 %v591
      %v612 = vpop.xlane.xlu0 %611
      %613 = vadd.xlane.f32.xlu0 %v592
      %v614 = vpop.xlane.xlu0 %613
      %615 = vadd.xlane.f32.xlu0 %v593
      %v616 = vpop.xlane.xlu0 %615
      %617 = vadd.xlane.f32.xlu0 %v594
      %v618 = vpop.xlane.xlu0 %617
      %619 = vadd.xlane.f32.xlu0 %v595
      %v620 = vpop.xlane.xlu0 %619
      %621 = vadd.xlane.f32.xlu0 %v596
      %v622 = vpop.xlane.xlu0 %621
      %623 = vadd.xlane.f32.xlu0 %v597
      %v624 = vpop.xlane.xlu0 %623
      %625 = vadd.xlane.f32.xlu0 %v598
      %v626 = vpop.xlane.xlu0 %625
      %627 = vadd.xlane.f32.xlu0 %v599
      %v628 = vpop.xlane.xlu0 %627
      %629 = vadd.xlane.f32.xlu0 %v600
      %v630 = vpop.xlane.xlu0 %629
      %631 = vadd.xlane.f32.xlu0 %v601
      %v632 = vpop.xlane.xlu0 %631
      %633 = vadd.xlane.f32.xlu0 %v602
      %v634 = vpop.xlane.xlu0 %633
      %v635 = vmul.f32 %v604, %v554
      %v636 = vmul.f32 %v606, %v554
      %v637 = vmul.f32 %v608, %v554
      %v638 = vmul.f32 %v610, %v554
      %v639 = vmul.f32 %v612, %v554
      %v640 = vmul.f32 %v614, %v554
      %v641 = vmul.f32 %v616, %v554
      %v642 = vmul.f32 %v618, %v554
      %v643 = vmul.f32 %v620, %v554
      %v644 = vmul.f32 %v622, %v554
      %v645 = vmul.f32 %v624, %v554
      %v646 = vmul.f32 %v626, %v554
      %v647 = vmul.f32 %v628, %v554
      %v648 = vmul.f32 %v630, %v554
      %v649 = vmul.f32 %v632, %v554
      %v650 = vmul.f32 %v634, %v554
      %v651 = vadd.f32 %v635, 1e-05
      %v652 = vadd.f32 %v636, 1e-05
      %v653 = vadd.f32 %v637, 1e-05
      %v654 = vadd.f32 %v638, 1e-05
      %v655 = vadd.f32 %v639, 1e-05
      %v656 = vadd.f32 %v640, 1e-05
      %v657 = vadd.f32 %v641, 1e-05
      %v658 = vadd.f32 %v642, 1e-05
      %v659 = vadd.f32 %v643, 1e-05
      %v660 = vadd.f32 %v644, 1e-05
      %v661 = vadd.f32 %v645, 1e-05
      %v662 = vadd.f32 %v646, 1e-05
      %v663 = vadd.f32 %v647, 1e-05
      %v664 = vadd.f32 %v648, 1e-05
      %v665 = vadd.f32 %v649, 1e-05
      %v666 = vadd.f32 %v650, 1e-05
      %v667 = vrsqrt.pop %v651
      %v668 = vrsqrt.pop %v652
      %v669 = vrsqrt.pop %v653
      %v670 = vrsqrt.pop %v654
      %v671 = vrsqrt.pop %v655
      %v672 = vrsqrt.pop %v656
      %v673 = vrsqrt.pop %v657
      %v674 = vrsqrt.pop %v658
      %v675 = vrsqrt.pop %v659
      %v676 = vrsqrt.pop %v660
      %v677 = vrsqrt.pop %v661
      %v678 = vrsqrt.pop %v662
      %v679 = vrsqrt.pop %v663
      %v680 = vrsqrt.pop %v664
      %v681 = vrsqrt.pop %v665
      %v682 = vrsqrt.pop %v666
      %v683 = vmul.f32 %v571, %v667
      %v684 = vmul.f32 %v572, %v668
      %v685 = vmul.f32 %v573, %v669
      %v686 = vmul.f32 %v574, %v670
      %v687 = vmul.f32 %v575, %v671
      %v688 = vmul.f32 %v576, %v672
      %v689 = vmul.f32 %v577, %v673
      %v690 = vmul.f32 %v578, %v674
      %v691 = vmul.f32 %v579, %v675
      %v692 = vmul.f32 %v580, %v676
      %v693 = vmul.f32 %v581, %v677
      %v694 = vmul.f32 %v582, %v678
      %v695 = vmul.f32 %v583, %v679
      %v696 = vmul.f32 %v584, %v680
      %v697 = vmul.f32 %v585, %v681
      %v698 = vmul.f32 %v586, %v682
      %v699 = vld [vmem:[%s3] sm:$0x1]
      %v701 = vlaneseq
      %v702 = vshrl.u32 %v701, 7
      %v703 = vsub.s32 0, %v702
      %v704 = vrot.slane %v699, %v703
      %v706 = vmul.f32 %v683, %v704
      %v707 = vmul.f32 %v684, %v704
      %v708 = vmul.f32 %v685, %v704
      %v709 = vmul.f32 %v686, %v704
      %v710 = vmul.f32 %v687, %v704
      %v711 = vmul.f32 %v688, %v704
      %v712 = vmul.f32 %v689, %v704
      %v713 = vmul.f32 %v690, %v704
      %v714 = vmul.f32 %v691, %v704
      %v715 = vmul.f32 %v692, %v704
      %v716 = vmul.f32 %v693, %v704
      %v717 = vmul.f32 %v694, %v704
      %v718 = vmul.f32 %v695, %v704
      %v719 = vmul.f32 %v696, %v704
      %v720 = vmul.f32 %v697, %v704
      %v721 = vmul.f32 %v698, %v704
      %v722 = vld [vmem:[%s4] sm:$0x1]
      %v724 = vlaneseq
      %v725 = vshrl.u32 %v724, 7
      %v726 = vsub.s32 0, %v725
      %v727 = vrot.slane %v722, %v726
      %v729 = vadd.f32 %v706, %v727
      %v730 = vadd.f32 %v707, %v727
      %v731 = vadd.f32 %v708, %v727
      %v732 = vadd.f32 %v709, %v727
      %v733 = vadd.f32 %v710, %v727
      %v734 = vadd.f32 %v711, %v727
      %v735 = vadd.f32 %v712, %v727
      %v736 = vadd.f32 %v713, %v727
      %v737 = vadd.f32 %v714, %v727
      %v738 = vadd.f32 %v715, %v727
      %v739 = vadd.f32 %v716, %v727
      %v740 = vadd.f32 %v717, %v727
      %v741 = vadd.f32 %v718, %v727
      %v742 = vadd.f32 %v719, %v727
      %v743 = vadd.f32 %v720, %v727
      %v744 = vadd.f32 %v721, %v727
      %v745 = vmax.f32 %v729, 0.0
      %v746 = vmax.f32 %v730, 0.0
      %v747 = vmax.f32 %v731, 0.0
      %v748 = vmax.f32 %v732, 0.0
      %v749 = vmax.f32 %v733, 0.0
      %v750 = vmax.f32 %v734, 0.0
      %v751 = vmax.f32 %v735, 0.0
      %v752 = vmax.f32 %v736, 0.0
      %v753 = vmax.f32 %v737, 0.0
      %v754 = vmax.f32 %v738, 0.0
      %v755 = vmax.f32 %v739, 0.0
      %v756 = vmax.f32 %v740, 0.0
      %v757 = vmax.f32 %v741, 0.0
      %v758 = vmax.f32 %v742, 0.0
      %v759 = vmax.f32 %v743, 0.0
      %v760 = vmax.f32 %v744, 0.0
      %v761 = vpack.c.bf16 %v746, %v745
      %v762 = vpack.c.bf16 %v748, %v747
      %v763 = vpack.c.bf16 %v750, %v749
      %v764 = vpack.c.bf16 %v752, %v751
      %v765 = vpack.c.bf16 %v754, %v753
      %v766 = vpack.c.bf16 %v756, %v755
      %v767 = vpack.c.bf16 %v758, %v757
      %v768 = vpack.c.bf16 %v760, %v759
      %v769 = vld [vmem:[%s5] sm:$0xf]
      %v770 = vld [vmem:[%s5 + $0x4] sm:$0xf]
      %v771 = vld [vmem:[%s5 + $0x8] sm:$0xf]
      %v772 = vld [vmem:[%s5 + $0xc] sm:$0xf]
      %v773 = vld [vmem:[%s5 + $0x10] sm:$0xf]
      %v774 = vld [vmem:[%s5 + $0x14] sm:$0xf]
      %v775 = vld [vmem:[%s5 + $0x18] sm:$0xf]
      %v776 = vld [vmem:[%s5 + $0x1c] sm:$0xf]
      %v777 = vld [vmem:[%s5 + $0x20] sm:$0xf]
      %v778 = vld [vmem:[%s5 + $0x24] sm:$0xf]
      %v779 = vld [vmem:[%s5 + $0x28] sm:$0xf]
      %v780 = vld [vmem:[%s5 + $0x2c] sm:$0xf]
      %v781 = vld [vmem:[%s5 + $0x30] sm:$0xf]
      %v782 = vld [vmem:[%s5 + $0x34] sm:$0xf]
      %v783 = vld [vmem:[%s5 + $0x38] sm:$0xf]
      %v784 = vld [vmem:[%s5 + $0x3c] sm:$0xf]
      %v785 = vld [vmem:[%s6] sm:$0x1]
      %v787 = vlaneseq
      %v788 = vshrl.u32 %v787, 7
      %v789 = vsub.s32 0, %v788
      %v790 = vrot.slane %v785, %v789
      %v808 = vunpack.c.l.b16 %v769
      %v809 = vunpack.c.l.b16 %v770
      %v810 = vunpack.c.l.b16 %v771
      %v811 = vunpack.c.l.b16 %v772
      %v812 = vunpack.c.l.b16 %v773
      %v813 = vunpack.c.l.b16 %v774
      %v814 = vunpack.c.l.b16 %v775
      %v815 = vunpack.c.l.b16 %v776
      %v816 = vunpack.c.l.b16 %v777
      %v817 = vunpack.c.l.b16 %v778
      %v818 = vunpack.c.l.b16 %v779
      %v819 = vunpack.c.l.b16 %v780
      %v820 = vunpack.c.l.b16 %v781
      %v821 = vunpack.c.l.b16 %v782
      %v822 = vunpack.c.l.b16 %v783
      %v823 = vunpack.c.l.b16 %v784
      %v824 = vpack.c.b16 %v809, %v808
      %v825 = vpack.c.b16 %v811, %v810
      %v826 = vpack.c.b16 %v813, %v812
      %v827 = vpack.c.b16 %v815, %v814
      %v828 = vpack.c.b16 %v817, %v816
      %v829 = vpack.c.b16 %v819, %v818
      %v830 = vpack.c.b16 %v821, %v820
      %v831 = vpack.c.b16 %v823, %v822
      %840 = vmatprep.subr.bf16.mxu0 0
      %841 = vmatpush1.bf16.msra.mxu0 %v824
      %842 = vmatprep.subr.bf16.mxu0 0
      %843 = vmatpush1.bf16.msra.mxu0 %v825
      %844 = vmatprep.subr.bf16.mxu0 0
      %845 = vmatpush1.bf16.msra.mxu0 %v826
      %846 = vmatprep.subr.bf16.mxu0 0
      %847 = vmatpush1.bf16.msra.mxu0 %v827
      %848 = vmatprep.subr.bf16.mxu0 0
      %849 = vmatpush1.bf16.msra.mxu0 %v828
      %850 = vmatprep.subr.bf16.mxu0 0
      %851 = vmatpush1.bf16.msra.mxu0 %v829
      %852 = vmatprep.subr.bf16.mxu0 0
      %853 = vmatpush1.bf16.msra.mxu0 %v830
      %854 = vmatprep.subr.bf16.mxu0 0
      %855 = vmatpush1.bf16.msra.mxu0 %v831
      %856 = vmatprep.subr.bf16.mxu0 0
      %857 = vmatpush1.bf16.msra.mxu0 0
      %858 = vmatprep.subr.bf16.mxu0 0
      %859 = vmatpush1.bf16.msra.mxu0 0
      %860 = vmatprep.subr.bf16.mxu0 0
      %861 = vmatpush1.bf16.msra.mxu0 0
      %862 = vmatprep.subr.bf16.mxu0 0
      %863 = vmatpush1.bf16.msra.mxu0 0
      %864 = vmatprep.subr.bf16.mxu0 0
      %865 = vmatpush1.bf16.msra.mxu0 0
      %866 = vmatprep.subr.bf16.mxu0 0
      %867 = vmatpush1.bf16.msra.mxu0 0
      %868 = vmatprep.subr.bf16.mxu0 0
      %869 = vmatpush1.bf16.msra.mxu0 0
      %870 = vmatprep.subr.bf16.mxu0 0
      %871 = vmatpush1.bf16.msra.mxu0 0
      %872 = vmatprep.mubr.bf16.mxu0 0
      %873 = vmatmul.mubr.bf16.gmra.mrb[0].mxu0 %v761
      %v874 = vpop.f32.mrb[0].mxu0
      %v875 = vadd.f32 %v790, %v874
      %v876 = vpop.f32.mrb[0].mxu0
      %v877 = vpop.f32.mrb[0].mxu0
      %v878 = vadd.f32 %v790, %v877
      %v879 = vpop.f32.mrb[0].mxu0
      %880 = vmatprep.mubr.bf16.mxu0 0
      %881 = vmatmul.mubr.bf16.gmra.mrb[0].mxu0 %v762
      %v882 = vpop.f32.mrb[0].mxu0
      %v883 = vadd.f32 %v790, %v882
      %v884 = vpop.f32.mrb[0].mxu0
      %v885 = vpop.f32.mrb[0].mxu0
      %v886 = vadd.f32 %v790, %v885
      %v887 = vpop.f32.mrb[0].mxu0
      %888 = vmatprep.mubr.bf16.mxu0 0
      %889 = vmatmul.mubr.bf16.gmra.mrb[0].mxu0 %v763
      %v890 = vpop.f32.mrb[0].mxu0
      %v891 = vadd.f32 %v790, %v890
      %v892 = vpop.f32.mrb[0].mxu0
      %v893 = vpop.f32.mrb[0].mxu0
      %v894 = vadd.f32 %v790, %v893
      %v895 = vpop.f32.mrb[0].mxu0
      %896 = vmatprep.mubr.bf16.mxu0 0
      %897 = vmatmul.mubr.bf16.gmra.mrb[0].mxu0 %v764
      %v898 = vpop.f32.mrb[0].mxu0
      %v899 = vadd.f32 %v790, %v898
      %v900 = vpop.f32.mrb[0].mxu0
      %v901 = vpop.f32.mrb[0].mxu0
      %v902 = vadd.f32 %v790, %v901
      %v903 = vpop.f32.mrb[0].mxu0
      %904 = vmatprep.mubr.bf16.mxu0 0
      %905 = vmatmul.mubr.bf16.gmra.mrb[0].mxu0 %v765
      %v906 = vpop.f32.mrb[0].mxu0
      %v907 = vadd.f32 %v790, %v906
      %v908 = vpop.f32.mrb[0].mxu0
      %v909 = vpop.f32.mrb[0].mxu0
      %v910 = vadd.f32 %v790, %v909
      %v911 = vpop.f32.mrb[0].mxu0
      %912 = vmatprep.mubr.bf16.mxu0 0
      %913 = vmatmul.mubr.bf16.gmra.mrb[0].mxu0 %v766
      %v914 = vpop.f32.mrb[0].mxu0
      %v915 = vadd.f32 %v790, %v914
      %v916 = vpop.f32.mrb[0].mxu0
      %v917 = vpop.f32.mrb[0].mxu0
      %v918 = vadd.f32 %v790, %v917
      %v919 = vpop.f32.mrb[0].mxu0
      %920 = vmatprep.mubr.bf16.mxu0 0
      %921 = vmatmul.mubr.bf16.gmra.mrb[0].mxu0 %v767
      %v922 = vpop.f32.mrb[0].mxu0
      %v923 = vadd.f32 %v790, %v922
      %v924 = vpop.f32.mrb[0].mxu0
      %v925 = vpop.f32.mrb[0].mxu0
      %v926 = vadd.f32 %v790, %v925
      %v927 = vpop.f32.mrb[0].mxu0
      %928 = vmatprep.mubr.bf16.mxu0 0
      %929 = vmatmul.mubr.bf16.gmra.mrb[0].mxu0 %v768
      %v930 = vpop.f32.mrb[0].mxu0
      %v931 = vadd.f32 %v790, %v930
      %v932 = vpop.f32.mrb[0].mxu0
      %v933 = vpop.f32.mrb[0].mxu0
      %v934 = vadd.f32 %v790, %v933
      %v935 = vpop.f32.mrb[0].mxu0
      %936 = vdwg.mxu0
      %v937 = vmax.f32 %v875, 0.0
      %v938 = vmax.f32 %v878, 0.0
      %v939 = vmax.f32 %v883, 0.0
      %v940 = vmax.f32 %v886, 0.0
      %v941 = vmax.f32 %v891, 0.0
      %v942 = vmax.f32 %v894, 0.0
      %v943 = vmax.f32 %v899, 0.0
      %v944 = vmax.f32 %v902, 0.0
      %v945 = vmax.f32 %v907, 0.0
      %v946 = vmax.f32 %v910, 0.0
      %v947 = vmax.f32 %v915, 0.0
      %v948 = vmax.f32 %v918, 0.0
      %v949 = vmax.f32 %v923, 0.0
      %v950 = vmax.f32 %v926, 0.0
      %v951 = vmax.f32 %v931, 0.0
      %v952 = vmax.f32 %v934, 0.0
      %v953 = vpack.c.bf16 %v938, %v937
      %v954 = vpack.c.bf16 %v940, %v939
      %v955 = vpack.c.bf16 %v942, %v941
      %v956 = vpack.c.bf16 %v944, %v943
      %v957 = vpack.c.bf16 %v946, %v945
      %v958 = vpack.c.bf16 %v948, %v947
      %v959 = vpack.c.bf16 %v950, %v949
      %v960 = vpack.c.bf16 %v952, %v951
      %v961 = vld [vmem:[%s7] sm:$0xf]
      %v962 = vld [vmem:[%s7 + $0x4] sm:$0xf]
      %v963 = vld [vmem:[%s7 + $0x8] sm:$0xf]
      %v964 = vld [vmem:[%s7 + $0xc] sm:$0xf]
      %v965 = vld [vmem:[%s7 + $0x10] sm:$0xf]
      %v966 = vld [vmem:[%s7 + $0x14] sm:$0xf]
      %v967 = vld [vmem:[%s7 + $0x18] sm:$0xf]
      %v968 = vld [vmem:[%s7 + $0x1c] sm:$0xf]
      %v969 = vld [vmem:[%s8] sm:$0x1]
      %v971 = vlaneseq
      %v972 = vshrl.u32 %v971, 7
      %v973 = vsub.s32 0, %v972
      %v974 = vrot.slane %v969, %v973
      %v984 = vunpack.c.l.b16 %v961
      %v985 = vunpack.c.l.b16 %v962
      %v986 = vunpack.c.l.b16 %v963
      %v987 = vunpack.c.l.b16 %v964
      %v988 = vunpack.c.l.b16 %v965
      %v989 = vunpack.c.l.b16 %v966
      %v990 = vunpack.c.l.b16 %v967
      %v991 = vunpack.c.l.b16 %v968
      %v992 = vpack.c.b16 %v985, %v984
      %v993 = vpack.c.b16 %v987, %v986
      %v994 = vpack.c.b16 %v989, %v988
      %v995 = vpack.c.b16 %v991, %v990
      %v1001 = vsel %vm400, %v953, 0
      %v1004 = vsel %vm400, %v954, 0
      %v1007 = vsel %vm400, %v955, 0
      %v1010 = vsel %vm400, %v956, 0
      %v1013 = vsel %vm400, %v957, 0
      %v1016 = vsel %vm400, %v958, 0
      %v1019 = vsel %vm400, %v959, 0
      %v1022 = vsel %vm400, %v960, 0
      %1024 = vmatprep.subr.bf16.mxu0 0
      %1025 = vmatpush1.bf16.msra.mxu0 %v992
      %1026 = vmatprep.subr.bf16.mxu0 0
      %1027 = vmatpush1.bf16.msra.mxu0 %v993
      %1028 = vmatprep.subr.bf16.mxu0 0
      %1029 = vmatpush1.bf16.msra.mxu0 %v994
      %1030 = vmatprep.subr.bf16.mxu0 0
      %1031 = vmatpush1.bf16.msra.mxu0 %v995
      %1032 = vmatprep.subr.bf16.mxu0 0
      %1033 = vmatpush1.bf16.msra.mxu0 0
      %1034 = vmatprep.subr.bf16.mxu0 0
      %1035 = vmatpush1.bf16.msra.mxu0 0
      %1036 = vmatprep.subr.bf16.mxu0 0
      %1037 = vmatpush1.bf16.msra.mxu0 0
      %1038 = vmatprep.subr.bf16.mxu0 0
      %1039 = vmatpush1.bf16.msra.mxu0 0
      %1040 = vmatprep.subr.bf16.mxu0 0
      %1041 = vmatpush1.bf16.msra.mxu0 0
      %1042 = vmatprep.subr.bf16.mxu0 0
      %1043 = vmatpush1.bf16.msra.mxu0 0
      %1044 = vmatprep.subr.bf16.mxu0 0
      %1045 = vmatpush1.bf16.msra.mxu0 0
      %1046 = vmatprep.subr.bf16.mxu0 0
      %1047 = vmatpush1.bf16.msra.mxu0 0
      %1048 = vmatprep.subr.bf16.mxu0 0
      %1049 = vmatpush1.bf16.msra.mxu0 0
      %1050 = vmatprep.subr.bf16.mxu0 0
      %1051 = vmatpush1.bf16.msra.mxu0 0
      %1052 = vmatprep.subr.bf16.mxu0 0
      %1053 = vmatpush1.bf16.msra.mxu0 0
      %1054 = vmatprep.subr.bf16.mxu0 0
      %1055 = vmatpush1.bf16.msra.mxu0 0
      %1056 = vmatprep.mubr.bf16.mxu0 0
      %1057 = vmatmul.mubr.bf16.gmra.mrb[0].mxu0 %v1001
      %v1058 = vpop.f32.mrb[0].mxu0
      %v1059 = vadd.f32 %v974, %v1058
      %v1060 = vpop.f32.mrb[0].mxu0
      %v1061 = vpop.f32.mrb[0].mxu0
      %v1062 = vadd.f32 %v974, %v1061
      %v1063 = vpop.f32.mrb[0].mxu0
      %1064 = vmatprep.mubr.bf16.mxu0 0
      %1065 = vmatmul.mubr.bf16.gmra.mrb[0].mxu0 %v1004
      %v1066 = vpop.f32.mrb[0].mxu0
      %v1067 = vadd.f32 %v974, %v1066
      %v1068 = vpop.f32.mrb[0].mxu0
      %v1069 = vpop.f32.mrb[0].mxu0
      %v1070 = vadd.f32 %v974, %v1069
      %v1071 = vpop.f32.mrb[0].mxu0
      %1072 = vmatprep.mubr.bf16.mxu0 0
      %1073 = vmatmul.mubr.bf16.gmra.mrb[0].mxu0 %v1007
      %v1074 = vpop.f32.mrb[0].mxu0
      %v1075 = vadd.f32 %v974, %v1074
      %v1076 = vpop.f32.mrb[0].mxu0
      %v1077 = vpop.f32.mrb[0].mxu0
      %v1078 = vadd.f32 %v974, %v1077
      %v1079 = vpop.f32.mrb[0].mxu0
      %1080 = vmatprep.mubr.bf16.mxu0 0
      %1081 = vmatmul.mubr.bf16.gmra.mrb[0].mxu0 %v1010
      %v1082 = vpop.f32.mrb[0].mxu0
      %v1083 = vadd.f32 %v974, %v1082
      %v1084 = vpop.f32.mrb[0].mxu0
      %v1085 = vpop.f32.mrb[0].mxu0
      %v1086 = vadd.f32 %v974, %v1085
      %v1087 = vpop.f32.mrb[0].mxu0
      %1088 = vmatprep.mubr.bf16.mxu0 0
      %1089 = vmatmul.mubr.bf16.gmra.mrb[0].mxu0 %v1013
      %v1090 = vpop.f32.mrb[0].mxu0
      %v1091 = vadd.f32 %v974, %v1090
      %v1092 = vpop.f32.mrb[0].mxu0
      %v1093 = vpop.f32.mrb[0].mxu0
      %v1094 = vadd.f32 %v974, %v1093
      %v1095 = vpop.f32.mrb[0].mxu0
      %1096 = vmatprep.mubr.bf16.mxu0 0
      %1097 = vmatmul.mubr.bf16.gmra.mrb[0].mxu0 %v1016
      %v1098 = vpop.f32.mrb[0].mxu0
      %v1099 = vadd.f32 %v974, %v1098
      %v1100 = vpop.f32.mrb[0].mxu0
      %v1101 = vpop.f32.mrb[0].mxu0
      %v1102 = vadd.f32 %v974, %v1101
      %v1103 = vpop.f32.mrb[0].mxu0
      %1104 = vmatprep.mubr.bf16.mxu0 0
      %1105 = vmatmul.mubr.bf16.gmra.mrb[0].mxu0 %v1019
      %v1106 = vpop.f32.mrb[0].mxu0
      %v1107 = vadd.f32 %v974, %v1106
      %v1108 = vpop.f32.mrb[0].mxu0
      %v1109 = vpop.f32.mrb[0].mxu0
      %v1110 = vadd.f32 %v974, %v1109
      %v1111 = vpop.f32.mrb[0].mxu0
      %1112 = vmatprep.mubr.bf16.mxu0 0
      %1113 = vmatmul.mubr.bf16.gmra.mrb[0].mxu0 %v1022
      %v1114 = vpop.f32.mrb[0].mxu0
      %v1115 = vadd.f32 %v974, %v1114
      %v1116 = vpop.f32.mrb[0].mxu0
      %v1117 = vpop.f32.mrb[0].mxu0
      %v1118 = vadd.f32 %v974, %v1117
      %v1119 = vpop.f32.mrb[0].mxu0
      %1120 = vdwg.mxu0
      %v1121 = vlaneseq
      %v1122 = vand.u32 %v1121, 127
      %vm1123 = vcmp.eq.s32.totalorder %v1122, 0
      %vm1124 = vcmp.eq.s32.totalorder %v1122, 1
      %v1125 = vsel %vm1124, 0.5, 1.0
      %v1126 = vsel %vm1123, 0.2, %v1125
      %v1127 = vxor.u32 %v1059, 2147483648
      %v1128 = vxor.u32 %v1062, 2147483648
      %v1129 = vxor.u32 %v1067, 2147483648
      %v1130 = vxor.u32 %v1070, 2147483648
      %v1131 = vxor.u32 %v1075, 2147483648
      %v1132 = vxor.u32 %v1078, 2147483648
      %v1133 = vxor.u32 %v1083, 2147483648
      %v1134 = vxor.u32 %v1086, 2147483648
      %v1135 = vxor.u32 %v1091, 2147483648
      %v1136 = vxor.u32 %v1094, 2147483648
      %v1137 = vxor.u32 %v1099, 2147483648
      %v1138 = vxor.u32 %v1102, 2147483648
      %v1139 = vxor.u32 %v1107, 2147483648
      %v1140 = vxor.u32 %v1110, 2147483648
      %v1141 = vxor.u32 %v1115, 2147483648
      %v1142 = vxor.u32 %v1118, 2147483648
      %v1143 = vmul.f32 %v1127, 1.442695
      %v1144 = vpow.pop %v1143
      %v1145 = vmul.f32 %v1128, 1.442695
      %v1146 = vpow.pop %v1145
      %v1147 = vmul.f32 %v1129, 1.442695
      %v1148 = vpow.pop %v1147
      %v1149 = vmul.f32 %v1130, 1.442695
      %v1150 = vpow.pop %v1149
      %v1151 = vmul.f32 %v1131, 1.442695
      %v1152 = vpow.pop %v1151
      %v1153 = vmul.f32 %v1132, 1.442695
      %v1154 = vpow.pop %v1153
      %v1155 = vmul.f32 %v1133, 1.442695
      %v1156 = vpow.pop %v1155
      %v1157 = vmul.f32 %v1134, 1.442695
      %v1158 = vpow.pop %v1157
      %v1159 = vmul.f32 %v1135, 1.442695
      %v1160 = vpow.pop %v1159
      %v1161 = vmul.f32 %v1136, 1.442695
      %v1162 = vpow.pop %v1161
      %v1163 = vmul.f32 %v1137, 1.442695
      %v1164 = vpow.pop %v1163
      %v1165 = vmul.f32 %v1138, 1.442695
      %v1166 = vpow.pop %v1165
      %v1167 = vmul.f32 %v1139, 1.442695
      %v1168 = vpow.pop %v1167
      %v1169 = vmul.f32 %v1140, 1.442695
      %v1170 = vpow.pop %v1169
      %v1171 = vmul.f32 %v1141, 1.442695
      %v1172 = vpow.pop %v1171
      %v1173 = vmul.f32 %v1142, 1.442695
      %v1174 = vpow.pop %v1173
      %v1175 = vadd.f32 %v1144, 1.0
      %v1176 = vadd.f32 %v1146, 1.0
      %v1177 = vadd.f32 %v1148, 1.0
      %v1178 = vadd.f32 %v1150, 1.0
      %v1179 = vadd.f32 %v1152, 1.0
      %v1180 = vadd.f32 %v1154, 1.0
      %v1181 = vadd.f32 %v1156, 1.0
      %v1182 = vadd.f32 %v1158, 1.0
      %v1183 = vadd.f32 %v1160, 1.0
      %v1184 = vadd.f32 %v1162, 1.0
      %v1185 = vadd.f32 %v1164, 1.0
      %v1186 = vadd.f32 %v1166, 1.0
      %v1187 = vadd.f32 %v1168, 1.0
      %v1188 = vadd.f32 %v1170, 1.0
      %v1189 = vadd.f32 %v1172, 1.0
      %v1190 = vadd.f32 %v1174, 1.0
      %v1191 = vrcp.pop %v1175
      %v1192 = vmul.f32 1.0, %v1191
      %v1193 = vrcp.pop %v1176
      %v1194 = vmul.f32 1.0, %v1193
      %v1195 = vrcp.pop %v1177
      %v1196 = vmul.f32 1.0, %v1195
      %v1197 = vrcp.pop %v1178
      %v1198 = vmul.f32 1.0, %v1197
      %v1199 = vrcp.pop %v1179
      %v1200 = vmul.f32 1.0, %v1199
      %v1201 = vrcp.pop %v1180
      %v1202 = vmul.f32 1.0, %v1201
      %v1203 = vrcp.pop %v1181
      %v1204 = vmul.f32 1.0, %v1203
      %v1205 = vrcp.pop %v1182
      %v1206 = vmul.f32 1.0, %v1205
      %v1207 = vrcp.pop %v1183
      %v1208 = vmul.f32 1.0, %v1207
      %v1209 = vrcp.pop %v1184
      %v1210 = vmul.f32 1.0, %v1209
      %v1211 = vrcp.pop %v1185
      %v1212 = vmul.f32 1.0, %v1211
      %v1213 = vrcp.pop %v1186
      %v1214 = vmul.f32 1.0, %v1213
      %v1215 = vrcp.pop %v1187
      %v1216 = vmul.f32 1.0, %v1215
      %v1217 = vrcp.pop %v1188
      %v1218 = vmul.f32 1.0, %v1217
      %v1219 = vrcp.pop %v1189
      %v1220 = vmul.f32 1.0, %v1219
      %v1221 = vrcp.pop %v1190
      %v1222 = vmul.f32 1.0, %v1221
      %v1223 = vmul.f32 %v1192, %v1126
      %v1224 = vmul.f32 %v1194, %v1126
      %v1225 = vmul.f32 %v1196, %v1126
      %v1226 = vmul.f32 %v1198, %v1126
      %v1227 = vmul.f32 %v1200, %v1126
      %v1228 = vmul.f32 %v1202, %v1126
      %v1229 = vmul.f32 %v1204, %v1126
      %v1230 = vmul.f32 %v1206, %v1126
      %v1231 = vmul.f32 %v1208, %v1126
      %v1232 = vmul.f32 %v1210, %v1126
      %v1233 = vmul.f32 %v1212, %v1126
      %v1234 = vmul.f32 %v1214, %v1126
      %v1235 = vmul.f32 %v1216, %v1126
      %v1236 = vmul.f32 %v1218, %v1126
      %v1237 = vmul.f32 %v1220, %v1126
      %v1238 = vmul.f32 %v1222, %v1126
      %vm1239 = vcmask 31744
      %1240 = vst.msk [vmem:[%s334] sm:$0xff] %vm1239, %v1223
      %1241 = vst.msk [vmem:[%s334 + $0x8] sm:$0xff] %vm1239, %v1224
      %1242 = vst.msk [vmem:[%s334 + $0x10] sm:$0xff] %vm1239, %v1225
      %1243 = vst.msk [vmem:[%s334 + $0x18] sm:$0xff] %vm1239, %v1226
      %1244 = vst.msk [vmem:[%s334 + $0x20] sm:$0xff] %vm1239, %v1227
      %1245 = vst.msk [vmem:[%s334 + $0x28] sm:$0xff] %vm1239, %v1228
      %1246 = vst.msk [vmem:[%s334 + $0x30] sm:$0xff] %vm1239, %v1229
      %1247 = vst.msk [vmem:[%s334 + $0x38] sm:$0xff] %vm1239, %v1230
      %1248 = vst.msk [vmem:[%s334 + $0x40] sm:$0xff] %vm1239, %v1231
      %1249 = vst.msk [vmem:[%s334 + $0x48] sm:$0xff] %vm1239, %v1232
      %1250 = vst.msk [vmem:[%s334 + $0x50] sm:$0xff] %vm1239, %v1233
      %1251 = vst.msk [vmem:[%s334 + $0x58] sm:$0xff] %vm1239, %v1234
      %1252 = vst.msk [vmem:[%s334 + $0x60] sm:$0xff] %vm1239, %v1235
      %1253 = vst.msk [vmem:[%s334 + $0x68] sm:$0xff] %vm1239, %v1236
      %1254 = vst.msk [vmem:[%s334 + $0x70] sm:$0xff] %vm1239, %v1237
      %1255 = vst.msk [vmem:[%s334 + $0x78] sm:$0xff] %vm1239, %v1238
      %s1256 = smul.u32 16, %s20
      %p1257 = scmp.lt.s32.totalorder %s1256, 31
      %s1258 = scalar_select %p1257, %s1256, 31
      %s1259 = smul.addr %s1258, 8
      %s1260 = scalar_lea.vmem %s9, %s1259
      // Predicated region
      $region57: #{risk_management_head.1} parent=55 // pred_check
        %p1261 = pneg %p232
      $region58: #{risk_management_head.1} parent=55 // pred_check_branch
        %1263 = sbr.rel (%p1261) target = $region60
      $region59: #{risk_management_head.1} parent=55 // pred_region
        %s1264 = smul.u32 16, %s20
      $region60: #{risk_management_head.1} parent=55 // pred_fallthru
        _
    $region56: #{risk_management_head.1} parent=5 // pred_fallthru
      _
    %p1265 = scmp.le.s32.totalorder 2, %s15
    // Predicated region
    $region61: #{risk_management_head.1} parent=5 // pred_check
      %p1266 = pneg %p1265
    $region62: #{risk_management_head.1} parent=5 // pred_check_branch
      %1268 = sbr.rel (%p1266) target = $region64
    $region63: #{risk_management_head.1} parent=5 // pred_region
      %s1269 = ssub.s32 %s15, 2
      // Predicated region
      $region65: #{risk_management_head.1} parent=63 // pred_check
        %p1270 = pneg %p238
      $region66: #{risk_management_head.1} parent=63 // pred_check_branch
        %1272 = sbr.rel (%p1270) target = $region68
      $region67: #{risk_management_head.1} parent=63 // pred_region
        %s1273 = smul.u32 16, %s21
        %p1274 = scmp.lt.s32.totalorder %s1273, 31
        %s1275 = scalar_select %p1274, %s1273, 31
        %s1276 = smul.addr %s1275, 8
        %s1277 = scalar_lea.vmem %s9, %s1276
      $region68: #{risk_management_head.1} parent=63 // pred_fallthru
        _
    $region64: #{risk_management_head.1} parent=5 // pred_fallthru
      _
  $region6: #{risk_management_head.1} parent=0 // loop_footer
    %s19 = sadd.s32 1, %s15
  $region7: #{risk_management_head.1} parent=0 // loop_footer_branch
    %14 = sbr.rel target = $region3
  $region8: #{risk_management_head.1} parent=0 // loop_exit
    _

</llo_original>
